<compile_context>
chip_gen: v7x
topology: tpu7x:2x2x1
jax: 0.10.0
libtpu: 0.0.40
codegen_flags: <defaults>
</compile_context>

<pallas_src>
import functools

import jax
import jax.numpy as jnp
from jax.experimental import pallas as pl
from jax.experimental.pallas import tpu as pltpu


def _performer_kernel(q_ref, k_ref, v_ref, mask_ref, proj_ref, o_ref,
                      qp_ref, ctx_ref, ksum_ref, smax_ref, *, eps):
    kt = pl.program_id(2)
    d = q_ref.shape[3]
    m = proj_ref.shape[1]
    ratio = float(m) ** -0.5
    half_inv_d = 0.5 / float(d)
    mm_dtype = q_ref.dtype                       # MXU operand dtype (bf16 path stays bf16)

    proj = proj_ref[...]                         # (d, m), d**-0.5 already folded in
    mask = mask_ref[0]                           # (tk, 1), input dtype
    k = k_ref[0, 0] * mask                       # (tk, d)
    v = v_ref[0, 0] * mask                       # (tk, d)

    # K-tile feature logits (MXU, f32 accumulation) + diag term (VPU, f32).
    kd = jnp.dot(k, proj, preferred_element_type=jnp.float32)          # (tk, m)
    k32 = k.astype(jnp.float32)
    k_diag = half_inv_d * jnp.sum(k32 * k32, axis=-1, keepdims=True)   # (tk, 1)
    s_tile = jnp.max(kd).reshape(1, 1)                                 # tile stabilizer

    @pl.when(kt == 0)
    def _init():
        # Q is resident across the kt sweep: map it to q' exactly once.
        q = q_ref[0, 0]                                                # (n, d)
        qd = jnp.dot(q, proj, preferred_element_type=jnp.float32)      # (n, m)
        q32 = q.astype(jnp.float32)
        q_diag = half_inv_d * jnp.sum(q32 * q32, axis=-1, keepdims=True)
        qp_ref[...] = ratio * (
            jnp.exp(qd - q_diag - jnp.max(qd, axis=-1, keepdims=True)) + eps)
        ctx_ref[...] = jnp.zeros_like(ctx_ref)
        ksum_ref[...] = jnp.zeros_like(ksum_ref)
        smax_ref[...] = s_tile

    # Online-stabilized accumulation over K/V tiles (rescale == 1 at kt == 0).
    s_prev = smax_ref[...]                                             # (1, 1)
    s_new = jnp.maximum(s_prev, s_tile)
    rescale = jnp.exp(s_prev - s_new)
    k_prime = ratio * (jnp.exp(kd - k_diag - s_new) + eps)             # (tk, m) f32
    # k'^T @ v: contract axis 0 of both operands — no transpose materialized.
    ctx_ref[...] = rescale * ctx_ref[...] + jax.lax.dot_general(
        k_prime.astype(mm_dtype), v, (((0,), (0,)), ((), ())),
        preferred_element_type=jnp.float32)                            # (m, d)
    ksum_ref[...] = rescale * ksum_ref[...] + jnp.sum(k_prime, axis=0, keepdims=True)
    smax_ref[...] = s_new

    @pl.when(kt == pl.num_programs(2) - 1)
    def _finalize():
        qp = qp_ref[...]                                               # (n, m) f32
        num = jnp.dot(qp.astype(mm_dtype), ctx_ref[...].astype(mm_dtype),
                      preferred_element_type=jnp.float32)              # (n, d)
        denom = jnp.sum(qp * ksum_ref[...], axis=-1, keepdims=True)    # (n, 1)
        inv = pl.reciprocal(jnp.maximum(denom, 1e-30), approx=True)    # EUP slot
        o_ref[0, 0] = (num * inv).astype(o_ref.dtype)                  # direct store


def _pick_seq_tile(n):
    for t in (512, 256, 128):
        if n % t == 0:
            return t
    return n  # TODO(synk): ragged sequence lengths would need masked tail tiles.


def performer_attention(Q, K, V, mask, proj):
    """Pallas wrapper. Q/K/V: (b, h, n, d); mask: (b, n) or None; proj: (m, d)."""
    b, h, n, d = Q.shape
    m = proj.shape[0]
    dtype = Q.dtype
    if mask is None:
        mask = jnp.ones((b, n), dtype)
    # Raw (b, n, 1) column — no x-heads broadcast in HBM.
    mask3 = mask.astype(dtype).reshape(b, n, 1)

    # Fold pre_scale * data_normalizer = d**-0.5 into the projection, transpose
    # to (d, m), and keep it in the MXU operand dtype (bf16 for bf16 inputs).
    proj_c = (proj.astype(jnp.float32) * (float(d) ** -0.5)).T.astype(dtype)  # (d, m)

    tk = _pick_seq_tile(n)
    n_kt = n // tk
    grid = (b, h, n_kt)

    in_specs = [
        pl.BlockSpec((1, 1, n, d), lambda bi, hi, ki: (bi, hi, 0, 0)),    # Q (resident over kt)
        pl.BlockSpec((1, 1, tk, d), lambda bi, hi, ki: (bi, hi, ki, 0)),  # K tile
        pl.BlockSpec((1, 1, tk, d), lambda bi, hi, ki: (bi, hi, ki, 0)),  # V tile
        pl.BlockSpec((1, tk, 1), lambda bi, hi, ki: (bi, ki, 0)),         # mask tile
        pl.BlockSpec((d, m), lambda bi, hi, ki: (0, 0)),                  # projection (resident)
    ]
    out_specs = pl.BlockSpec((1, 1, n, d), lambda bi, hi, ki: (bi, hi, 0, 0))

    scratch_shapes = [
        pltpu.VMEM((n, m), jnp.float32),   # q'
        pltpu.VMEM((m, d), jnp.float32),   # ctx accumulator (k'^T v)
        pltpu.VMEM((1, m), jnp.float32),   # ksum accumulator (sum_n k')
        pltpu.VMEM((1, 1), jnp.float32),   # running k-feature stabilizer
    ]

    # Explicit VMEM budget with a per-generation cap (25% headroom for compiler
    # scratch / internal buffers).
    isz = jnp.dtype(dtype).itemsize
    f32b = 4
    need = (
        2 * (2 * n * d * isz          # Q block + output block (double-buffered)
             + 2 * tk * d * isz       # K, V tiles
             + tk * 128 * isz         # mask tile (lane-padded column)
             + d * m * isz)           # projection
        + (n * m + m * d + 8 * m + 8 * 128) * f32b            # scratch
        + (3 * tk * m + 2 * n * m + 2 * n * d + n * 128) * f32b  # live f32 temporaries
        + (8 << 20)
    )
    try:
        cap = int(pltpu.get_tpu_info().vmem_capacity_bytes)
    except Exception:
        cap = 64 << 20
    vmem_bytes = int(min(max(need, 32 << 20), (cap * 3) // 4))

    kernel = functools.partial(_performer_kernel, eps=1e-4)

    return pl.pallas_call(
        kernel,
        out_shape=jax.ShapeDtypeStruct((b, h, n, d), dtype),
        grid=grid,
        in_specs=in_specs,
        out_specs=out_specs,
        scratch_shapes=scratch_shapes,
        compiler_params=pltpu.CompilerParams(
            dimension_semantics=("parallel", "parallel", "arbitrary"),
            vmem_limit_bytes=vmem_bytes),
    )(Q, K, V, mask3, proj_c)


def gaussian_orthogonal_random_matrix(key, nb_rows, nb_cols):
    """Deterministic re-implementation of performer_pytorch's projection init (scaling=0)."""
    n_full = nb_rows // nb_cols
    keys = jax.random.split(key, n_full + 2)
    blocks = []
    for i in range(n_full):
        g = jax.random.normal(keys[i], (nb_cols, nb_cols), jnp.float32)
        qm, _ = jnp.linalg.qr(g)
        blocks.append(qm.T)
    rem = nb_rows - n_full * nb_cols
    if rem > 0:
        g = jax.random.normal(keys[n_full], (nb_cols, nb_cols), jnp.float32)
        qm, _ = jnp.linalg.qr(g)
        blocks.append(qm.T[:rem])
    final = jnp.concatenate(blocks, axis=0)
    multiplier = jnp.linalg.norm(
        jax.random.normal(keys[-1], (nb_rows, nb_cols), jnp.float32), axis=1)
    return multiplier[:, None] * final


def _reference(Q, K, V, mask, proj):
    """Plain-JAX reference mirroring the PyTorch forward.

    Note: the key-feature stabilizer is the per-(batch, head) max, matching the
    kernel's converged online stabilizer; performer_pytorch uses one global max
    over the whole tensor, which differs only at the eps=1e-4 floor level.
    """
    b, h, n, d = Q.shape
    m = proj.shape[0]
    scale = float(d) ** -0.5
    ratio = float(m) ** -0.5
    eps = 1e-4
    mb = mask[:, None, :, None]
    k = K * mb
    v = V * mb

    qd = jnp.einsum('bhnd,md->bhnm', Q, proj) * scale
    kd = jnp.einsum('bhnd,md->bhnm', k, proj) * scale
    q_diag = 0.5 / d * jnp.sum(Q * Q, axis=-1, keepdims=True)
    k_diag = 0.5 / d * jnp.sum(k * k, axis=-1, keepdims=True)
    qp = ratio * (jnp.exp(qd - q_diag - jnp.max(qd, axis=-1, keepdims=True)) + eps)
    kp = ratio * (jnp.exp(kd - k_diag - jnp.max(kd, axis=(2, 3), keepdims=True)) + eps)

    k_sum = jnp.sum(kp, axis=-2)                                   # (b, h, m)
    denom = jnp.einsum('bhnm,bhm->bhn', qp, k_sum)
    ctx = jnp.einsum('bhnm,bhnd->bhmd', kp, v)
    return jnp.einsum('bhnm,bhmd->bhnd', qp, ctx) / denom[..., None]


if __name__ == "__main__":
    key = jax.random.PRNGKey(0)
    kq, kk, kv, kp = jax.random.split(key, 4)

    batch, heads, seq, head_dim, rp_dim = 2, 2, 8, 32, 64
    Q = jax.random.normal(kq, (batch, heads, seq, head_dim), jnp.float32)
    K = jax.random.normal(kk, (batch, heads, seq, head_dim), jnp.float32)
    V = jax.random.normal(kv, (batch, heads, seq, head_dim), jnp.float32)
    # mask: first batch fully valid, second batch masks out the last 3 tokens.
    lengths = jnp.array([seq, seq - 3])
    mask = (jnp.arange(seq)[None, :] < lengths[:, None]).astype(jnp.float32)

    proj = gaussian_orthogonal_random_matrix(kp, rp_dim, head_dim)

    out = performer_attention(Q, K, V, mask, proj)
    out = jax.block_until_ready(out)

    ref = _reference(Q, K, V, mask, proj)
    assert out.shape == (batch, heads, seq, head_dim)
    max_err = float(jnp.max(jnp.abs(out - ref)))
    # Tolerance covers the EUP approximate-reciprocal path used in the kernel.
    assert jnp.allclose(out, ref, rtol=2e-3, atol=2e-3), max_err

    print("KERNEL_OK")
</pallas_src>

<mosaic_0001>
module attributes {stable_mosaic.version = 11 : i64} {
  func.func @_performer_kernel(%arg0: i32, %arg1: i32, %arg2: i32, %arg3: memref<1x1x8x32xf32, #tpu.memory_space<vmem>>, %arg4: memref<1x1x8x32xf32, #tpu.memory_space<vmem>>, %arg5: memref<1x1x8x32xf32, #tpu.memory_space<vmem>>, %arg6: memref<1x8x1xf32, #tpu.memory_space<vmem>>, %arg7: memref<32x64xf32, #tpu.memory_space<vmem>>, %arg8: memref<1x1x8x32xf32, #tpu.memory_space<vmem>>, %arg9: memref<8x64xf32, #tpu.memory_space<vmem>>, %arg10: memref<64x32xf32, #tpu.memory_space<vmem>>, %arg11: memref<1x64xf32, #tpu.memory_space<vmem>>, %arg12: memref<1x1xf32, #tpu.memory_space<vmem>>) attributes {dimension_semantics = [#tpu.dimension_semantics<parallel>, #tpu.dimension_semantics<parallel>, #tpu.dimension_semantics<arbitrary>], iteration_bounds = array<i64: 2, 2, 1>, scalar_prefetch = 0 : i64, scratch_operands = 4 : i64, tpu.core_type = #tpu.core_type<tc>, window_params = [{transform_indices = @transform_0, window_bounds = array<i64: 1, 1, 8, 32>}, {transform_indices = @transform_1, window_bounds = array<i64: 1, 1, 8, 32>}, {transform_indices = @transform_2, window_bounds = array<i64: 1, 1, 8, 32>}, {transform_indices = @transform_3, window_bounds = array<i64: 1, 8, 1>}, {pipeline_mode = #tpu.pipeline_mode<synchronous>, transform_indices = @transform_4, window_bounds = array<i64: 32, 64>}, {transform_indices = @transform_5, window_bounds = array<i64: 1, 1, 8, 32>}]} {
    %c0 = arith.constant 0 : index
    %c0_0 = arith.constant 0 : index
    %0 = vector.load %arg7[%c0, %c0_0] : memref<32x64xf32, #tpu.memory_space<vmem>>, vector<32x64xf32>
    %c0_1 = arith.constant 0 : index
    %c0_2 = arith.constant 0 : index
    %c0_3 = arith.constant 0 : index
    %1 = vector.load %arg6[%c0_1, %c0_2, %c0_3] : memref<1x8x1xf32, #tpu.memory_space<vmem>>, vector<1x8x1xf32>
    %2 = vector.shape_cast %1 : vector<1x8x1xf32> to vector<8x1xf32>
    %c0_4 = arith.constant 0 : index
    %c0_5 = arith.constant 0 : index
    %c0_6 = arith.constant 0 : index
    %c0_7 = arith.constant 0 : index
    %3 = vector.load %arg4[%c0_4, %c0_5, %c0_6, %c0_7] : memref<1x1x8x32xf32, #tpu.memory_space<vmem>>, vector<1x1x8x32xf32>
    %4 = vector.shape_cast %3 : vector<1x1x8x32xf32> to vector<8x32xf32>
    %5 = vector.broadcast %2 : vector<8x1xf32> to vector<8x32xf32>
    %6 = arith.mulf %4, %5 : vector<8x32xf32>
    %c0_8 = arith.constant 0 : index
    %c0_9 = arith.constant 0 : index
    %c0_10 = arith.constant 0 : index
    %c0_11 = arith.constant 0 : index
    %7 = vector.load %arg5[%c0_8, %c0_9, %c0_10, %c0_11] : memref<1x1x8x32xf32, #tpu.memory_space<vmem>>, vector<1x1x8x32xf32>
    %8 = vector.shape_cast %7 : vector<1x1x8x32xf32> to vector<8x32xf32>
    %9 = vector.broadcast %2 : vector<8x1xf32> to vector<8x32xf32>
    %10 = arith.mulf %8, %9 : vector<8x32xf32>
    %cst = arith.constant dense<0.000000e+00> : vector<8x64xf32>
    %11 = tpu.matmul %6, %0, %cst {dimension_numbers = #tpu.dot_dimension_numbers<[1], [0], [0], [1], [0, 0, 1, 1], [], []>} : vector<8x32xf32>, vector<32x64xf32>, vector<8x64xf32> -> vector<8x64xf32>
    %12 = arith.mulf %6, %6 : vector<8x32xf32>
    %cst_12 = arith.constant dense<0.000000e+00> : vector<8xf32>
    %13 = vector.multi_reduction <add>, %12, %cst_12 [1] : vector<8x32xf32> to vector<8xf32>
    %14 = vector.shape_cast %13 : vector<8xf32> to vector<8x1xf32>
    %cst_13 = arith.constant 1.562500e-02 : f32
    %15 = vector.broadcast %cst_13 : f32 to vector<8x1xf32>
    %16 = arith.mulf %15, %14 : vector<8x1xf32>
    %17 = vector.shape_cast %11 : vector<8x64xf32> to vector<1x8x64xf32>
    %cst_14 = arith.constant dense<0xFF800000> : vector<1xf32>
    %18 = vector.multi_reduction <maximumf>, %17, %cst_14 [1, 2] : vector<1x8x64xf32> to vector<1xf32>
    %19 = vector.shape_cast %18 : vector<1xf32> to vector<1x1x1xf32>
    %20 = vector.extract %19[0, 0, 0] : f32 from vector<1x1x1xf32>
    %21 = vector.broadcast %20 : f32 to vector<1x1xf32>
    %c0_i32 = arith.constant 0 : i32
    %22 = arith.cmpi eq, %arg2, %c0_i32 : i32
    %23 = arith.extui %22 : i1 to i32
    %c0_i32_15 = arith.constant 0 : i32
    %24 = arith.cmpi ne, %23, %c0_i32_15 : i32
    scf.if %24 {
      %c0_34 = arith.constant 0 : index
      %c0_35 = arith.constant 0 : index
      %c0_36 = arith.constant 0 : index
      %c0_37 = arith.constant 0 : index
      %55 = vector.load %arg3[%c0_34, %c0_35, %c0_36, %c0_37] : memref<1x1x8x32xf32, #tpu.memory_space<vmem>>, vector<1x1x8x32xf32>
      %56 = vector.shape_cast %55 : vector<1x1x8x32xf32> to vector<8x32xf32>
      %cst_38 = arith.constant dense<0.000000e+00> : vector<8x64xf32>
      %57 = tpu.matmul %56, %0, %cst_38 {dimension_numbers = #tpu.dot_dimension_numbers<[1], [0], [0], [1], [0, 0, 1, 1], [], []>} : vector<8x32xf32>, vector<32x64xf32>, vector<8x64xf32> -> vector<8x64xf32>
      %58 = arith.mulf %56, %56 : vector<8x32xf32>
      %cst_39 = arith.constant dense<0.000000e+00> : vector<8xf32>
      %59 = vector.multi_reduction <add>, %58, %cst_39 [1] : vector<8x32xf32> to vector<8xf32>
      %60 = vector.shape_cast %59 : vector<8xf32> to vector<8x1xf32>
      %cst_40 = arith.constant 1.562500e-02 : f32
      %61 = vector.broadcast %cst_40 : f32 to vector<8x1xf32>
      %62 = arith.mulf %61, %60 : vector<8x1xf32>
      %63 = vector.broadcast %62 : vector<8x1xf32> to vector<8x64xf32>
      %64 = arith.subf %57, %63 : vector<8x64xf32>
      %cst_41 = arith.constant dense<0xFF800000> : vector<8xf32>
      %65 = vector.multi_reduction <maximumf>, %57, %cst_41 [1] : vector<8x64xf32> to vector<8xf32>
      %66 = vector.shape_cast %65 : vector<8xf32> to vector<8x1xf32>
      %67 = vector.broadcast %66 : vector<8x1xf32> to vector<8x64xf32>
      %68 = arith.subf %64, %67 : vector<8x64xf32>
      %69 = math.exp %68 : vector<8x64xf32>
      %cst_42 = arith.constant 9.99999974E-5 : f32
      %70 = vector.broadcast %cst_42 : f32 to vector<8x64xf32>
      %71 = arith.addf %69, %70 : vector<8x64xf32>
      %cst_43 = arith.constant 1.250000e-01 : f32
      %72 = vector.broadcast %cst_43 : f32 to vector<8x64xf32>
      %73 = arith.mulf %72, %71 : vector<8x64xf32>
      %c0_44 = arith.constant 0 : index
      %c0_45 = arith.constant 0 : index
      %74 = vector.load %arg9[%c0_44, %c0_45] : memref<8x64xf32, #tpu.memory_space<vmem>>, vector<8x64xf32>
      tpu.vector_store %arg9[%c0_44, %c0_45], %73 {strides = array<i32>} : memref<8x64xf32, #tpu.memory_space<vmem>>, vector<8x64xf32>,
      %cst_46 = arith.constant 0.000000e+00 : f32
      %75 = vector.broadcast %cst_46 : f32 to vector<64x32xf32>
      %c0_47 = arith.constant 0 : index
      %c0_48 = arith.constant 0 : index
      %76 = vector.load %arg10[%c0_47, %c0_48] : memref<64x32xf32, #tpu.memory_space<vmem>>, vector<64x32xf32>
      tpu.vector_store %arg10[%c0_47, %c0_48], %75 {strides = array<i32>} : memref<64x32xf32, #tpu.memory_space<vmem>>, vector<64x32xf32>,
      %cst_49 = arith.constant 0.000000e+00 : f32
      %77 = vector.broadcast %cst_49 : f32 to vector<1x64xf32>
      %c0_50 = arith.constant 0 : index
      %c0_51 = arith.constant 0 : index
      %78 = vector.load %arg11[%c0_50, %c0_51] : memref<1x64xf32, #tpu.memory_space<vmem>>, vector<1x64xf32>
      tpu.vector_store %arg11[%c0_50, %c0_51], %77 {strides = array<i32>} : memref<1x64xf32, #tpu.memory_space<vmem>>, vector<1x64xf32>,
      %c0_52 = arith.constant 0 : index
      %c0_53 = arith.constant 0 : index
      %79 = vector.load %arg12[%c0_52, %c0_53] : memref<1x1xf32, #tpu.memory_space<vmem>>, vector<1x1xf32>
      tpu.vector_store %arg12[%c0_52, %c0_53], %21 {strides = array<i32>} : memref<1x1xf32, #tpu.memory_space<vmem>>, vector<1x1xf32>,
    } else {
    }
    %c0_16 = arith.constant 0 : index
    %c0_17 = arith.constant 0 : index
    %25 = vector.load %arg12[%c0_16, %c0_17] : memref<1x1xf32, #tpu.memory_space<vmem>>, vector<1x1xf32>
    %26 = arith.maximumf %25, %21 : vector<1x1xf32>
    %27 = arith.subf %25, %26 : vector<1x1xf32>
    %28 = math.exp %27 : vector<1x1xf32>
    %29 = vector.broadcast %16 : vector<8x1xf32> to vector<8x64xf32>
    %30 = arith.subf %11, %29 : vector<8x64xf32>
    %31 = vector.broadcast %26 : vector<1x1xf32> to vector<8x64xf32>
    %32 = arith.subf %30, %31 : vector<8x64xf32>
    %33 = math.exp %32 : vector<8x64xf32>
    %cst_18 = arith.constant 9.99999974E-5 : f32
    %34 = vector.broadcast %cst_18 : f32 to vector<8x64xf32>
    %35 = arith.addf %33, %34 : vector<8x64xf32>
    %cst_19 = arith.constant 1.250000e-01 : f32
    %36 = vector.broadcast %cst_19 : f32 to vector<8x64xf32>
    %37 = arith.mulf %36, %35 : vector<8x64xf32>
    %c0_20 = arith.constant 0 : index
    %c0_21 = arith.constant 0 : index
    %38 = vector.load %arg10[%c0_20, %c0_21] : memref<64x32xf32, #tpu.memory_space<vmem>>, vector<64x32xf32>
    %39 = vector.broadcast %28 : vector<1x1xf32> to vector<64x32xf32>
    %40 = arith.mulf %39, %38 : vector<64x32xf32>
    %cst_22 = arith.constant dense<0.000000e+00> : vector<64x32xf32>
    %41 = tpu.matmul %37, %10, %cst_22 {dimension_numbers = #tpu.dot_dimension_numbers<[0], [0], [1], [1], [0, 1, 1, 1], [], []>} : vector<8x64xf32>, vector<8x32xf32>, vector<64x32xf32> -> vector<64x32xf32>
    %42 = arith.addf %40, %41 : vector<64x32xf32>
    %c0_23 = arith.constant 0 : index
    %c0_24 = arith.constant 0 : index
    %43 = vector.load %arg10[%c0_23, %c0_24] : memref<64x32xf32, #tpu.memory_space<vmem>>, vector<64x32xf32>
    tpu.vector_store %arg10[%c0_23, %c0_24], %42 {strides = array<i32>} : memref<64x32xf32, #tpu.memory_space<vmem>>, vector<64x32xf32>,
    %c0_25 = arith.constant 0 : index
    %c0_26 = arith.constant 0 : index
    %44 = vector.load %arg11[%c0_25, %c0_26] : memref<1x64xf32, #tpu.memory_space<vmem>>, vector<1x64xf32>
    %45 = vector.broadcast %28 : vector<1x1xf32> to vector<1x64xf32>
    %46 = arith.mulf %45, %44 : vector<1x64xf32>
    %cst_27 = arith.constant dense<0.000000e+00> : vector<64xf32>
    %47 = vector.multi_reduction <add>, %37, %cst_27 [0] : vector<8x64xf32> to vector<64xf32>
    %48 = vector.shape_cast %47 : vector<64xf32> to vector<1x64xf32>
    %49 = arith.addf %46, %48 : vector<1x64xf32>
    %c0_28 = arith.constant 0 : index
    %c0_29 = arith.constant 0 : index
    %50 = vector.load %arg11[%c0_28, %c0_29] : memref<1x64xf32, #tpu.memory_space<vmem>>, vector<1x64xf32>
    tpu.vector_store %arg11[%c0_28, %c0_29], %49 {strides = array<i32>} : memref<1x64xf32, #tpu.memory_space<vmem>>, vector<1x64xf32>,
    %c0_30 = arith.constant 0 : index
    %c0_31 = arith.constant 0 : index
    %51 = vector.load %arg12[%c0_30, %c0_31] : memref<1x1xf32, #tpu.memory_space<vmem>>, vector<1x1xf32>
    tpu.vector_store %arg12[%c0_30, %c0_31], %26 {strides = array<i32>} : memref<1x1xf32, #tpu.memory_space<vmem>>, vector<1x1xf32>,
    %c0_i32_32 = arith.constant 0 : i32
    %52 = arith.cmpi eq, %arg2, %c0_i32_32 : i32
    %53 = arith.extui %52 : i1 to i32
    %c0_i32_33 = arith.constant 0 : i32
    %54 = arith.cmpi ne, %53, %c0_i32_33 : i32
    scf.if %54 {
      %c0_34 = arith.constant 0 : index
      %c0_35 = arith.constant 0 : index
      %55 = vector.load %arg9[%c0_34, %c0_35] : memref<8x64xf32, #tpu.memory_space<vmem>>, vector<8x64xf32>
      %c0_36 = arith.constant 0 : index
      %c0_37 = arith.constant 0 : index
      %56 = vector.load %arg10[%c0_36, %c0_37] : memref<64x32xf32, #tpu.memory_space<vmem>>, vector<64x32xf32>
      %cst_38 = arith.constant dense<0.000000e+00> : vector<8x32xf32>
      %57 = tpu.matmul %55, %56, %cst_38 {dimension_numbers = #tpu.dot_dimension_numbers<[1], [0], [0], [1], [0, 0, 1, 1], [], []>} : vector<8x64xf32>, vector<64x32xf32>, vector<8x32xf32> -> vector<8x32xf32>
      %c0_39 = arith.constant 0 : index
      %c0_40 = arith.constant 0 : index
      %58 = vector.load %arg11[%c0_39, %c0_40] : memref<1x64xf32, #tpu.memory_space<vmem>>, vector<1x64xf32>
      %59 = vector.broadcast %58 : vector<1x64xf32> to vector<8x64xf32>
      %60 = arith.mulf %55, %59 : vector<8x64xf32>
      %cst_41 = arith.constant dense<0.000000e+00> : vector<8xf32>
      %61 = vector.multi_reduction <add>, %60, %cst_41 [1] : vector<8x64xf32> to vector<8xf32>
      %62 = vector.shape_cast %61 : vector<8xf32> to vector<8x1xf32>
      %cst_42 = arith.constant 1.000000e-30 : f32
      %63 = vector.broadcast %cst_42 : f32 to vector<8x1xf32>
      %64 = arith.maximumf %62, %63 : vector<8x1xf32>
      %65 = tpu.reciprocal %64 {approx = true} : vector<8x1xf32> -> vector<8x1xf32>
      %66 = vector.broadcast %65 : vector<8x1xf32> to vector<8x32xf32>
      %67 = arith.mulf %57, %66 : vector<8x32xf32>
      %c0_43 = arith.constant 0 : index
      %c0_44 = arith.constant 0 : index
      %c0_45 = arith.constant 0 : index
      %c0_46 = arith.constant 0 : index
      %68 = vector.load %arg8[%c0_43, %c0_44, %c0_45, %c0_46] : memref<1x1x8x32xf32, #tpu.memory_space<vmem>>, vector<1x1x8x32xf32>
      %69 = vector.shape_cast %68 : vector<1x1x8x32xf32> to vector<8x32xf32>
      %70 = vector.shape_cast %67 : vector<8x32xf32> to vector<1x1x8x32xf32>
      tpu.vector_store %arg8[%c0_43, %c0_44, %c0_45, %c0_46], %70 {strides = array<i32>} : memref<1x1x8x32xf32, #tpu.memory_space<vmem>>, vector<1x1x8x32xf32>,
    } else {
    }
    return
  }
  func.func @transform_0(%arg0: i32, %arg1: i32, %arg2: i32) -> (i32, i32, i32, i32) {
    %c0_i32 = arith.constant 0 : i32
    %c0_i32_0 = arith.constant 0 : i32
    %c0_i32_1 = arith.constant 0 : i32
    return %arg0, %arg1, %c0_i32, %c0_i32_0 : i32, i32, i32, i32
  }
  func.func @transform_1(%arg0: i32, %arg1: i32, %arg2: i32) -> (i32, i32, i32, i32) {
    %c0_i32 = arith.constant 0 : i32
    %c0_i32_0 = arith.constant 0 : i32
    return %arg0, %arg1, %arg2, %c0_i32 : i32, i32, i32, i32
  }
  func.func @transform_2(%arg0: i32, %arg1: i32, %arg2: i32) -> (i32, i32, i32, i32) {
    %c0_i32 = arith.constant 0 : i32
    %c0_i32_0 = arith.constant 0 : i32
    return %arg0, %arg1, %arg2, %c0_i32 : i32, i32, i32, i32
  }
  func.func @transform_3(%arg0: i32, %arg1: i32, %arg2: i32) -> (i32, i32, i32) {
    %c0_i32 = arith.constant 0 : i32
    %c0_i32_0 = arith.constant 0 : i32
    return %arg0, %arg2, %c0_i32 : i32, i32, i32
  }
  func.func @transform_4(%arg0: i32, %arg1: i32, %arg2: i32) -> (i32, i32) {
    %c0_i32 = arith.constant 0 : i32
    %c0_i32_0 = arith.constant 0 : i32
    %c0_i32_1 = arith.constant 0 : i32
    return %c0_i32, %c0_i32_0 : i32, i32
  }
  func.func @transform_5(%arg0: i32, %arg1: i32, %arg2: i32) -> (i32, i32, i32, i32) {
    %c0_i32 = arith.constant 0 : i32
    %c0_i32_0 = arith.constant 0 : i32
    %c0_i32_1 = arith.constant 0 : i32
    return %arg0, %arg1, %c0_i32, %c0_i32_0 : i32, i32, i32, i32
  }
}

</mosaic_0001>

<llo_original>
// kernel: tpu_custom_call.1
$region0: #{tpu_custom_call.1}
  #allocation0 [shape = 'u32[]', space=smem, size = 0x4, offset = 0x4, fixed_abs, tag = 'smem constant byte address 0x4 - core index']
  #allocation1 [shape = 'u32[144,128]{1,0:T(1,128)}', space=vmem, size = 0x12000, scoped, tag = 'internal scratch']
  #allocation2 [shape = 'f32[8,64]{1,0:T(8,128)}', space=vmem, size = 0x1000, scoped, tag = 'scratch operand']
  #allocation3 [shape = 'f32[64,32]{1,0:T(8,128)}', space=vmem, size = 0x8000, scoped, tag = 'scratch operand']
  #allocation4 [shape = 'f32[1,64]{1,0:T(1,128)}', space=vmem, size = 0x200, scoped, tag = 'scratch operand']
  #allocation5 [shape = 'f32[1,1]{1,0:T(1,128)}', space=vmem, size = 0x200, scoped, tag = 'scratch operand']
  %s0 = inlined_call_operand.hbm [shape: f32[2,2,8,32], index: 0, kind: input, shape index: {}]
  %s1 = inlined_call_operand.hbm [shape: f32[2,2,8,32], index: 1, kind: input, shape index: {}]
  %s2 = inlined_call_operand.hbm [shape: f32[2,2,8,32], index: 2, kind: input, shape index: {}]
  %s3 = inlined_call_operand.vmem [shape: f32[2,8,1], index: 3, kind: input, shape index: {}]
  %s4 = inlined_call_operand.vmem [shape: f32[32,64], index: 4, kind: input, shape index: {}]
  %s5 = inlined_call_operand.hbm [shape: f32[2,2,8,32], index: 5, kind: output, shape index: {}]
  %s6 = sld [smem:[#allocation0]]
  $region73: #{tpu_custom_call.1} parent=0
    _
  %s8 = ssub.s32 1, %s6
  %s9 = scalar_select 0, %s8, %s6
  $region1: #{tpu_custom_call.1} parent=0
    #allocation6 [shape = 'u8[8192]{0}', space=vmem, size = 0x2000, scoped, tag = 'input window, operand 0']
    #allocation7 [shape = 's32[2]{0}', space=sflag, size = 0x8, scoped, tag = 'scoped memory for tpu_custom_call.1']
    #allocation8 [shape = 's32[2]{0}', space=sflag, size = 0x8, scoped, tag = 'scoped memory for tpu_custom_call.1']
    #allocation9 [shape = 'u8[8192]{0}', space=vmem, size = 0x2000, scoped, tag = 'input window, operand 1']
    #allocation10 [shape = 's32[2]{0}', space=sflag, size = 0x8, scoped, tag = 'scoped memory for tpu_custom_call.1']
    #allocation11 [shape = 'u8[8192]{0}', space=vmem, size = 0x2000, scoped, tag = 'input window, operand 2']
    #allocation12 [shape = 'u8[8192]{0}', space=vmem, size = 0x2000, scoped, tag = 'output window, operand 0']
    %10 = vsyncpa [#allocation7], 0
    %s11 = scalar_lea.sflag [#allocation7], 1
    %12 = vsyncpa %s11, 0
    %13 = vsyncpa [#allocation10], 0
    %s14 = scalar_lea.sflag [#allocation10], 1
    %15 = vsyncpa %s14, 0
    %16 = vsyncpa [#allocation8], 0
    %s17 = scalar_lea.sflag [#allocation8], 1
    %18 = vsyncpa %s17, 0
    loop: start=0, step=1, limit=6
    $region2: #{tpu_custom_call.1} parent=1 // loop_pre_header
      _
    $region3: #{tpu_custom_call.1} parent=1 // loop_header
      %s20 = sphi 0, %s24
      %p21 = scmp.ge.s32.totalorder %s20, 6
      %s27 = sphi 0, %s46
      %s28 = sphi 0, %s42
      %s29 = sphi 0, %s38
      %s30 = sphi 0, %s27
      %s31 = sphi 0, %s28
      %s32 = sphi 0, %s29
      %s33 = sphi 0, %s30
      %s34 = sphi 0, %s31
      %s35 = sphi 0, %s32
      %s51 = sphi 0, %s53
      %s54 = sphi 0, %s51
      %s55 = sphi 0, %s54
      %s71 = sphi 0, %s55
      %s81 = sphi 0, %s83
      %s84 = sphi 0, %s81
      %s85 = sphi 0, %s84
      %s101 = sphi 0, %s85
      %s111 = sphi 0, %s113
      %s114 = sphi 0, %s111
      %s115 = sphi 0, %s114
      %s131 = sphi 0, %s115
      %s139 = sphi 0, %s141
      %s142 = sphi 0, %s139
      %s143 = sphi 0, %s142
      %s159 = sphi 0, %s143
      %s163 = sphi 0, %s163
      %s165 = sphi 0, %s163
      %s166 = sphi 0, %s165
      %s180 = sphi 0, %s166
      %s188 = sphi 0, %s190
      %s191 = sphi 0, %s188
      %s192 = sphi 0, %s191
      %s208 = sphi 0, %s192
    $region4: #{tpu_custom_call.1} parent=1 // loop_header_branch
      %23 = sbr.rel (%p21) target = $region8
    $region5: #{tpu_custom_call.1} parent=1 // loop_body
      %s25 = ssub.s32 %s20, 1
      %s26 = ssub.s32 %s20, 2
      %s36 = sadd.s32 1, %s29
      %p37 = scmp.ge.s32.totalorder %s36, 1
      %s38 = scalar_select %p37, 0, %s36
      %s39 = sadd.s32 1, %s28
      %s40 = scalar_select %p37, %s39, %s28
      %p41 = scmp.ge.s32.totalorder %s40, 2
      %s42 = scalar_select %p41, 0, %s40
      %s43 = sadd.s32 1, %s27
      %s44 = scalar_select %p41, %s43, %s27
      %p45 = scmp.ge.s32.totalorder %s44, 2
      %s46 = scalar_select %p45, 0, %s44
      %s47 = ssub.s32 %s27, %s46
      %s48 = ssub.s32 %s28, %s42
      %s49 = sor.u32 %s47, %s48
      %p50 = scmp.eq.s32.totalorder %s49, 0
      %s52 = sadd.s32 %s51, 1
      %s53 = scalar_select %p50, %s51, %s52
      %p56 = pneg %p50
      %p57 = scmp.eq.s32.totalorder %s20, 3
      %p58 = por %p56, %p57
      %p59 = scmp.ne.s32.totalorder %s51, %s54
      %p60 = scmp.eq.s32.totalorder %s20, 0
      %p61 = por %p59, %p60
      %p62 = scmp.ne.s32.totalorder %s51, %s54
      %p63 = scmp.eq.s32.totalorder %s25, 3
      %p64 = por %p62, %p63
      %p65 = scmp.ne.s32.totalorder %s54, %s55
      %p66 = scmp.eq.s32.totalorder %s25, 0
      %p67 = por %p65, %p66
      %p68 = scmp.ne.s32.totalorder %s54, %s55
      %p69 = scmp.eq.s32.totalorder %s26, 3
      %p70 = por %p68, %p69
      %p72 = scmp.ne.s32.totalorder %s55, %s71
      %p73 = scmp.eq.s32.totalorder %s26, 0
      %p74 = por %p72, %p73
      %s75 = ssub.s32 %s27, %s46
      %s76 = ssub.s32 %s28, %s42
      %s77 = sor.u32 %s75, %s76
      %s78 = ssub.s32 %s29, %s38
      %s79 = sor.u32 %s77, %s78
      %p80 = scmp.eq.s32.totalorder %s79, 0
      %s82 = sadd.s32 %s81, 1
      %s83 = scalar_select %p80, %s81, %s82
      %p86 = pneg %p80
      %p87 = scmp.eq.s32.totalorder %s20, 3
      %p88 = por %p86, %p87
      %p89 = scmp.ne.s32.totalorder %s81, %s84
      %p90 = scmp.eq.s32.totalorder %s20, 0
      %p91 = por %p89, %p90
      %p92 = scmp.ne.s32.totalorder %s81, %s84
      %p93 = scmp.eq.s32.totalorder %s25, 3
      %p94 = por %p92, %p93
      %p95 = scmp.ne.s32.totalorder %s84, %s85
      %p96 = scmp.eq.s32.totalorder %s25, 0
      %p97 = por %p95, %p96
      %p98 = scmp.ne.s32.totalorder %s84, %s85
      %p99 = scmp.eq.s32.totalorder %s26, 3
      %p100 = por %p98, %p99
      %p102 = scmp.ne.s32.totalorder %s85, %s101
      %p103 = scmp.eq.s32.totalorder %s26, 0
      %p104 = por %p102, %p103
      %s105 = ssub.s32 %s27, %s46
      %s106 = ssub.s32 %s28, %s42
      %s107 = sor.u32 %s105, %s106
      %s108 = ssub.s32 %s29, %s38
      %s109 = sor.u32 %s107, %s108
      %p110 = scmp.eq.s32.totalorder %s109, 0
      %s112 = sadd.s32 %s111, 1
      %s113 = scalar_select %p110, %s111, %s112
      %p116 = pneg %p110
      %p117 = scmp.eq.s32.totalorder %s20, 3
      %p118 = por %p116, %p117
      %p119 = scmp.ne.s32.totalorder %s111, %s114
      %p120 = scmp.eq.s32.totalorder %s20, 0
      %p121 = por %p119, %p120
      %p122 = scmp.ne.s32.totalorder %s111, %s114
      %p123 = scmp.eq.s32.totalorder %s25, 3
      %p124 = por %p122, %p123
      %p125 = scmp.ne.s32.totalorder %s114, %s115
      %p126 = scmp.eq.s32.totalorder %s25, 0
      %p127 = por %p125, %p126
      %p128 = scmp.ne.s32.totalorder %s114, %s115
      %p129 = scmp.eq.s32.totalorder %s26, 3
      %p130 = por %p128, %p129
      %p132 = scmp.ne.s32.totalorder %s115, %s131
      %p133 = scmp.eq.s32.totalorder %s26, 0
      %p134 = por %p132, %p133
      %s135 = ssub.s32 %s27, %s46
      %s136 = ssub.s32 %s29, %s38
      %s137 = sor.u32 %s135, %s136
      %p138 = scmp.eq.s32.totalorder %s137, 0
      %s140 = sadd.s32 %s139, 1
      %s141 = scalar_select %p138, %s139, %s140
      %p144 = pneg %p138
      %p145 = scmp.eq.s32.totalorder %s20, 3
      %p146 = por %p144, %p145
      %p147 = scmp.ne.s32.totalorder %s139, %s142
      %p148 = scmp.eq.s32.totalorder %s20, 0
      %p149 = por %p147, %p148
      %p150 = scmp.ne.s32.totalorder %s139, %s142
      %p151 = scmp.eq.s32.totalorder %s25, 3
      %p152 = por %p150, %p151
      %p153 = scmp.ne.s32.totalorder %s142, %s143
      %p154 = scmp.eq.s32.totalorder %s25, 0
      %p155 = por %p153, %p154
      %p156 = scmp.ne.s32.totalorder %s142, %s143
      %p157 = scmp.eq.s32.totalorder %s26, 3
      %p158 = por %p156, %p157
      %p160 = scmp.ne.s32.totalorder %s143, %s159
      %p161 = scmp.eq.s32.totalorder %s26, 0
      %p162 = por %p160, %p161
      %s164 = sadd.s32 %s163, 1
      %p167 = scmp.eq.s32.totalorder %s20, 3
      %p168 = scmp.ne.s32.totalorder %s163, %s165
      %p169 = scmp.eq.s32.totalorder %s20, 0
      %p170 = por %p168, %p169
      %p171 = scmp.ne.s32.totalorder %s163, %s165
      %p172 = scmp.eq.s32.totalorder %s25, 3
      %p173 = por %p171, %p172
      %p174 = scmp.ne.s32.totalorder %s165, %s166
      %p175 = scmp.eq.s32.totalorder %s25, 0
      %p176 = por %p174, %p175
      %p177 = scmp.ne.s32.totalorder %s165, %s166
      %p178 = scmp.eq.s32.totalorder %s26, 3
      %p179 = por %p177, %p178
      %p181 = scmp.ne.s32.totalorder %s166, %s180
      %p182 = scmp.eq.s32.totalorder %s26, 0
      %p183 = por %p181, %p182
      %s184 = ssub.s32 %s27, %s46
      %s185 = ssub.s32 %s28, %s42
      %s186 = sor.u32 %s184, %s185
      %p187 = scmp.eq.s32.totalorder %s186, 0
      %s189 = sadd.s32 %s188, 1
      %s190 = scalar_select %p187, %s188, %s189
      %p193 = pneg %p187
      %p194 = scmp.eq.s32.totalorder %s20, 3
      %p195 = por %p193, %p194
      %p196 = scmp.ne.s32.totalorder %s188, %s191
      %p197 = scmp.eq.s32.totalorder %s20, 0
      %p198 = por %p196, %p197
      %p199 = scmp.ne.s32.totalorder %s188, %s191
      %p200 = scmp.eq.s32.totalorder %s25, 3
      %p201 = por %p199, %p200
      %p202 = scmp.ne.s32.totalorder %s191, %s192
      %p203 = scmp.eq.s32.totalorder %s25, 0
      %p204 = por %p202, %p203
      %p205 = scmp.ne.s32.totalorder %s191, %s192
      %p206 = scmp.eq.s32.totalorder %s26, 3
      %p207 = por %p205, %p206
      %p209 = scmp.ne.s32.totalorder %s192, %s208
      %p210 = scmp.eq.s32.totalorder %s26, 0
      %p211 = por %p209, %p210
      %p212 = scmp.le.s32.totalorder 1, %s20
      %p213 = scmp.lt.s32.totalorder %s20, 5
      %p214 = pnand %p212, %p213
      %p215 = pneg %p214
      // Predicated region
      $region9: #{tpu_custom_call.1} parent=5 // pred_check
        _
      $region10: #{tpu_custom_call.1} parent=5 // pred_check_branch
        %217 = sbr.rel (%p214) target = $region12
      $region11: #{tpu_custom_call.1} parent=5 // pred_region
        %s218 = ssub.s32 %s20, 1
        // Predicated region
        $region13: #{tpu_custom_call.1} parent=11 // pred_check
          %p219 = pneg %p176
        $region14: #{tpu_custom_call.1} parent=11 // pred_check_branch
          %221 = sbr.rel (%p219) target = $region16
        $region15: #{tpu_custom_call.1} parent=11 // pred_region
          _
        $region16: #{tpu_custom_call.1} parent=11 // pred_fallthru
          _
      $region12: #{tpu_custom_call.1} parent=5 // pred_fallthru
        _
      %p222 = scmp.lt.s32.totalorder %s20, 4
      // Predicated region
      $region17: #{tpu_custom_call.1} parent=5 // pred_check
        %p223 = pneg %p222
      $region18: #{tpu_custom_call.1} parent=5 // pred_check_branch
        %225 = sbr.rel (%p223) target = $region20
      $region19: #{tpu_custom_call.1} parent=5 // pred_region
        // Predicated region
        $region21: #{tpu_custom_call.1} parent=19 // pred_check
          %p226 = pneg %p61
        $region22: #{tpu_custom_call.1} parent=19 // pred_check_branch
          %228 = sbr.rel (%p226) target = $region24
        $region23: #{tpu_custom_call.1} parent=19 // pred_region
          %s229 = sand.u32 %s51, 1
          %s230 = scalar_lea.sflag [#allocation7], %s229
          %s231 = sand.u32 %s51, 1
          %s232 = smul.addr %s231, 8
          %s233 = scalar_lea.vmem [#allocation6], %s232
          %s235 = ssub.s32 128, 128
          %236 = vsyncadd %s230, %s235
          %s237 = smul.addr %s27, 2
          %s238 = sadd.s32 %s28, %s237
          %s239 = smul.addr %s238, 128
          %s240 = scalar_lea.hbm %s0, %s239
          %s242 = sshll.u32 %s233, 4
          %s243 = int_to_ptr.vmem [resolvable:$true] %s242
          %245 = dma.hbm_to_vmem [thread:$0]  %s240, 128, %s243, %s230
        $region24: #{tpu_custom_call.1} parent=19 // pred_fallthru
          _
        // Predicated region
        $region25: #{tpu_custom_call.1} parent=19 // pred_check
          %p246 = pneg %p91
        $region26: #{tpu_custom_call.1} parent=19 // pred_check_branch
          %248 = sbr.rel (%p246) target = $region28
        $region27: #{tpu_custom_call.1} parent=19 // pred_region
          %s249 = sand.u32 %s20, 1
          %s250 = scalar_lea.sflag [#allocation10], %s249
          %s251 = sand.u32 %s81, 1
          %s252 = smul.addr %s251, 8
          %s253 = scalar_lea.vmem [#allocation9], %s252
          %s255 = ssub.s32 128, 128
          %256 = vsyncadd %s250, %s255
          %s257 = sadd.s32 %s29, %s28
          %s258 = smul.addr %s27, 2
          %s259 = sadd.s32 %s257, %s258
          %s260 = smul.addr %s259, 128
          %s261 = scalar_lea.hbm %s1, %s260
          %s263 = sshll.u32 %s253, 4
          %s264 = int_to_ptr.vmem [resolvable:$true] %s263
          %266 = dma.hbm_to_vmem [thread:$0]  %s261, 128, %s264, %s250
        $region28: #{tpu_custom_call.1} parent=19 // pred_fallthru
          _
        // Predicated region
        $region29: #{tpu_custom_call.1} parent=19 // pred_check
          %p267 = pneg %p121
        $region30: #{tpu_custom_call.1} parent=19 // pred_check_branch
          %269 = sbr.rel (%p267) target = $region32
        $region31: #{tpu_custom_call.1} parent=19 // pred_region
          %s270 = sand.u32 %s20, 1
          %s271 = scalar_lea.sflag [#allocation10], %s270
          %s272 = sand.u32 %s111, 1
          %s273 = smul.addr %s272, 8
          %s274 = scalar_lea.vmem [#allocation11], %s273
          %s276 = ssub.s32 128, 128
          %277 = vsyncadd %s271, %s276
          %s278 = sadd.s32 %s29, %s28
          %s279 = smul.addr %s27, 2
          %s280 = sadd.s32 %s278, %s279
          %s281 = smul.addr %s280, 128
          %s282 = scalar_lea.hbm %s2, %s281
          %s284 = sshll.u32 %s274, 4
          %s285 = int_to_ptr.vmem [resolvable:$true] %s284
          %287 = dma.hbm_to_vmem [thread:$0]  %s282, 128, %s285, %s271
        $region32: #{tpu_custom_call.1} parent=19 // pred_fallthru
          _
        // Predicated region
        $region33: #{tpu_custom_call.1} parent=19 // pred_check
          %p288 = pneg %p149
        $region34: #{tpu_custom_call.1} parent=19 // pred_check_branch
          %290 = sbr.rel (%p288) target = $region36
        $region35: #{tpu_custom_call.1} parent=19 // pred_region
          %p291 = scmp.lt.s32.totalorder %s27, 1
          %s292 = scalar_select %p291, %s27, 1
          %p293 = scmp.lt.s32.totalorder %s29, 0
          %s294 = scalar_select %p293, %s29, 0
          %s295 = sadd.s32 %s294, %s292
          %s296 = smul.addr %s295, 8
          %s297 = scalar_lea.vmem %s3, %s296
        $region36: #{tpu_custom_call.1} parent=19 // pred_fallthru
          _
      $region20: #{tpu_custom_call.1} parent=5 // pred_fallthru
        _
      %p298 = scmp.le.s32.totalorder 1, %s20
      %p299 = scmp.lt.s32.totalorder %s20, 5
      %p300 = pnand %p298, %p299
      %p301 = pneg %p300
      // Predicated region
      $region37: #{tpu_custom_call.1} parent=5 // pred_check
        _
      $region38: #{tpu_custom_call.1} parent=5 // pred_check_branch
        %303 = sbr.rel (%p300) target = $region40
      $region39: #{tpu_custom_call.1} parent=5 // pred_region
        %s304 = ssub.s32 %s20, 1
        %s305 = sand.u32 %s54, 1
        %s306 = scalar_lea.sflag [#allocation7], %s305
        %s307 = sand.u32 %s54, 1
        %s308 = smul.addr %s307, 8
        %s309 = scalar_lea.vmem [#allocation6], %s308
        // Predicated region
        $region41: #{tpu_custom_call.1} parent=39 // pred_check
          %p310 = pneg %p67
        $region42: #{tpu_custom_call.1} parent=39 // pred_check_branch
          %312 = sbr.rel (%p310) target = $region44
        $region43: #{tpu_custom_call.1} parent=39 // pred_region
          %313 = dma.done %s306, 128
        $region44: #{tpu_custom_call.1} parent=39 // pred_fallthru
          _
        %s314 = sand.u32 %s25, 1
        %s315 = scalar_lea.sflag [#allocation10], %s314
        %s316 = sand.u32 %s84, 1
        %s317 = smul.addr %s316, 8
        %s318 = scalar_lea.vmem [#allocation9], %s317
        // Predicated region
        $region45: #{tpu_custom_call.1} parent=39 // pred_check
          %p319 = pneg %p97
        $region46: #{tpu_custom_call.1} parent=39 // pred_check_branch
          %321 = sbr.rel (%p319) target = $region48
        $region47: #{tpu_custom_call.1} parent=39 // pred_region
          %322 = dma.done %s315, 128
        $region48: #{tpu_custom_call.1} parent=39 // pred_fallthru
          _
        %s323 = sand.u32 %s25, 1
        %s324 = scalar_lea.sflag [#allocation10], %s323
        %s325 = sand.u32 %s114, 1
        %s326 = smul.addr %s325, 8
        %s327 = scalar_lea.vmem [#allocation11], %s326
        // Predicated region
        $region49: #{tpu_custom_call.1} parent=39 // pred_check
          %p328 = pneg %p127
        $region50: #{tpu_custom_call.1} parent=39 // pred_check_branch
          %330 = sbr.rel (%p328) target = $region52
        $region51: #{tpu_custom_call.1} parent=39 // pred_region
          %331 = dma.done %s324, 128
        $region52: #{tpu_custom_call.1} parent=39 // pred_fallthru
          _
        %s332 = sand.u32 %s54, 1
        %s333 = scalar_lea.sflag [#allocation7], %s332
        %s334 = sand.u32 %s54, 1
        %s335 = smul.addr %s334, 8
        %s336 = scalar_lea.vmem [#allocation6], %s335
        %p337 = pneg %p67
        %p338 = pneg %p64
        %s339 = sand.u32 %s25, 1
        %s340 = scalar_lea.sflag [#allocation10], %s339
        %s341 = sand.u32 %s84, 1
        %s342 = smul.addr %s341, 8
        %s343 = scalar_lea.vmem [#allocation9], %s342
        %p344 = pneg %p97
        %p345 = pneg %p94
        %s346 = sand.u32 %s25, 1
        %s347 = scalar_lea.sflag [#allocation10], %s346
        %s348 = sand.u32 %s114, 1
        %s349 = smul.addr %s348, 8
        %s350 = scalar_lea.vmem [#allocation11], %s349
        %p351 = pneg %p127
        %p352 = pneg %p124
        %p353 = scmp.lt.s32.totalorder %s30, 1
        %s354 = scalar_select %p353, %s30, 1
        %p355 = scmp.lt.s32.totalorder %s32, 0
        %s356 = scalar_select %p355, %s32, 0
        %s357 = sadd.s32 %s356, %s354
        %s358 = smul.addr %s357, 8
        %s359 = scalar_lea.vmem %s3, %s358
        %p360 = pneg %p155
        %p361 = pneg %p152
        %p362 = pneg %p176
        %p363 = pneg %p173
        %p364 = pneg %p204
        %p365 = pneg %p201
        %s366 = sand.u32 %s191, 1
        %s367 = scalar_lea.sflag [#allocation8], %s366
        %s368 = sand.u32 %s191, 1
        %s369 = smul.addr %s368, 8
        %s370 = scalar_lea.vmem [#allocation12], %s369
        %p371 = scmp.lt.s32.totalorder %s30, 1
        %s372 = scalar_select %p371, %s30, 1
        %p373 = scmp.lt.s32.totalorder %s32, 0
        %s374 = scalar_select %p373, %s32, 0
        %s375 = sadd.s32 %s374, %s372
        %s376 = smul.addr %s375, 8
        %s377 = scalar_lea.vmem %s3, %s376
        %v378 = vld [vmem:[%s4] sm:$0xff]
        %v379 = vld [vmem:[%s4 + $0x8] sm:$0xff]
        %v380 = vld [vmem:[%s4 + $0x10] sm:$0xff]
        %v381 = vld [vmem:[%s4 + $0x18] sm:$0xff]
        %v382 = vld [vmem:[%s377] sm:$0xff]
        %v383 = vld [vmem:[%s318] sm:$0xff]
        %385 = vset.pattern.permute.xlu0 0
        %386 = vperm.xlu0 %385, %v382
        %v387 = vpop.permute.xlu0 %386
        %v389 = vmul.f32 %v383, %v387
        %v390 = vld [vmem:[%s327] sm:$0xff]
        %v391 = vmul.f32 %v390, %v387
        %vm392 = vcmask 261120
        %v394 = vsel %vm392, %v389, 0
        %396 = vmatprep.subr.mxu0 0.0
        %397 = vmatpush1.msra.mxu0 %v378
        %398 = vmatprep.subr.mxu0 0.0
        %399 = vmatpush1.msra.mxu0 %v379
        %400 = vmatprep.subr.mxu0 0.0
        %401 = vmatpush1.msra.mxu0 %v380
        %402 = vmatprep.subr.mxu0 0.0
        %403 = vmatpush1.msra.mxu0 %v381
        %404 = vmatprep.subr.mxu0 0.0
        %405 = vmatpush1.msra.mxu0 0.0
        %406 = vmatprep.subr.mxu0 0.0
        %407 = vmatpush1.msra.mxu0 0.0
        %408 = vmatprep.subr.mxu0 0.0
        %409 = vmatpush1.msra.mxu0 0.0
        %410 = vmatprep.subr.mxu0 0.0
        %411 = vmatpush1.msra.mxu0 0.0
        %412 = vmatprep.subr.mxu0 0.0
        %413 = vmatpush1.msra.mxu0 0.0
        %414 = vmatprep.subr.mxu0 0.0
        %415 = vmatpush1.msra.mxu0 0.0
        %416 = vmatprep.subr.mxu0 0.0
        %417 = vmatpush1.msra.mxu0 0.0
        %418 = vmatprep.subr.mxu0 0.0
        %419 = vmatpush1.msra.mxu0 0.0
        %420 = vmatprep.subr.mxu0 0.0
        %421 = vmatpush1.msra.mxu0 0.0
        %422 = vmatprep.subr.mxu0 0.0
        %423 = vmatpush1.msra.mxu0 0.0
        %424 = vmatprep.subr.mxu0 0.0
        %425 = vmatpush1.msra.mxu0 0.0
        %426 = vmatprep.subr.mxu0 0.0
        %427 = vmatpush1.msra.mxu0 0.0
        %428 = vmatprep.subr.mxu0 0.0
        %429 = vmatpush1.msra.mxu0 0.0
        %430 = vmatprep.subr.mxu0 0.0
        %431 = vmatpush1.msra.mxu0 0.0
        %432 = vmatprep.subr.mxu0 0.0
        %433 = vmatpush1.msra.mxu0 0.0
        %434 = vmatprep.subr.mxu0 0.0
        %435 = vmatpush1.msra.mxu0 0.0
        %436 = vmatprep.subr.mxu0 0.0
        %437 = vmatpush1.msra.mxu0 0.0
        %438 = vmatprep.subr.mxu0 0.0
        %439 = vmatpush1.msra.mxu0 0.0
        %440 = vmatprep.subr.mxu0 0.0
        %441 = vmatpush1.msra.mxu0 0.0
        %442 = vmatprep.subr.mxu0 0.0
        %443 = vmatpush1.msra.mxu0 0.0
        %444 = vmatprep.subr.mxu0 0.0
        %445 = vmatpush1.msra.mxu0 0.0
        %446 = vmatprep.subr.mxu0 0.0
        %447 = vmatpush1.msra.mxu0 0.0
        %448 = vmatprep.subr.mxu0 0.0
        %449 = vmatpush1.msra.mxu0 0.0
        %450 = vmatprep.subr.mxu0 0.0
        %451 = vmatpush1.msra.mxu0 0.0
        %452 = vmatprep.subr.mxu0 0.0
        %453 = vmatpush1.msra.mxu0 0.0
        %454 = vmatprep.subr.mxu0 0.0
        %455 = vmatpush1.msra.mxu0 0.0
        %456 = vmatprep.subr.mxu0 0.0
        %457 = vmatpush1.msra.mxu0 0.0
        %458 = vmatprep.subr.mxu0 0.0
        %459 = vmatpush1.msra.mxu0 0.0
        %460 = vmatprep.mubr.f32.mxu0 0.0
        %461 = vmatmul.mubr.f32.gmra.mrb[0].mxu0 %v394
        %v462 = vpop.f32.mrb[0].mxu0
        %v463 = vadd.f32 0.0, %v462
        %v464 = vpop.f32.mrb[0].mxu0
        %465 = vdwg.mxu0
        %v466 = vmul.f32 %v389, %v389
        %v467 = vsel %vm392, %v466, 0.0
        %468 = vadd.xlane.f32.xlu0 %v467
        %v469 = vpop.xlane.xlu0 %468
        %v470 = vmul.f32 %v469, 0.015625
        %vm471 = vcmask 523264
        %v472 = vsel %vm471, %v463, -inf
        %473 = vmax.xlane.f32.xlu0 %v472
        %v474 = vpop.xlane.xlu0 %473
        %v475 = vrot.slane %v474, 4
        %v476 = vmax.f32 %v474, %v475
        %v477 = vrot.slane %v476, 2
        %v478 = vmax.f32 %v476, %v477
        %v479 = vrot.slane %v478, 1
        %v480 = vmax.f32 %v478, %v479
        %s481 = vtos %v480
        %v482 = vstv %s481
        %p483 = scmp.eq.s32.totalorder %s32, 0
        // Predicated region
        $region53: #{tpu_custom_call.1} parent=39 // pred_check
          %p484 = pneg %p483
        $region54: #{tpu_custom_call.1} parent=39 // pred_check_branch
          %486 = sbr.rel (%p484) target = $region56
        $region55: #{tpu_custom_call.1} parent=39 // pred_region
          %v487 = vld [vmem:[%s309] sm:$0xff]
          %v489 = vsel %vm392, %v487, 0
          %491 = vmatprep.subr.mxu0 0.0
          %492 = vmatpush1.msra.mxu0 %v378
          %493 = vmatprep.subr.mxu0 0.0
          %494 = vmatpush1.msra.mxu0 %v379
          %495 = vmatprep.subr.mxu0 0.0
          %496 = vmatpush1.msra.mxu0 %v380
          %497 = vmatprep.subr.mxu0 0.0
          %498 = vmatpush1.msra.mxu0 %v381
          %499 = vmatprep.subr.mxu0 0.0
          %500 = vmatpush1.msra.mxu0 0.0
          %501 = vmatprep.subr.mxu0 0.0
          %502 = vmatpush1.msra.mxu0 0.0
          %503 = vmatprep.subr.mxu0 0.0
          %504 = vmatpush1.msra.mxu0 0.0
          %505 = vmatprep.subr.mxu0 0.0
          %506 = vmatpush1.msra.mxu0 0.0
          %507 = vmatprep.subr.mxu0 0.0
          %508 = vmatpush1.msra.mxu0 0.0
          %509 = vmatprep.subr.mxu0 0.0
          %510 = vmatpush1.msra.mxu0 0.0
          %511 = vmatprep.subr.mxu0 0.0
          %512 = vmatpush1.msra.mxu0 0.0
          %513 = vmatprep.subr.mxu0 0.0
          %514 = vmatpush1.msra.mxu0 0.0
          %515 = vmatprep.subr.mxu0 0.0
          %516 = vmatpush1.msra.mxu0 0.0
          %517 = vmatprep.subr.mxu0 0.0
          %518 = vmatpush1.msra.mxu0 0.0
          %519 = vmatprep.subr.mxu0 0.0
          %520 = vmatpush1.msra.mxu0 0.0
          %521 = vmatprep.subr.mxu0 0.0
          %522 = vmatpush1.msra.mxu0 0.0
          %523 = vmatprep.subr.mxu0 0.0
          %524 = vmatpush1.msra.mxu0 0.0
          %525 = vmatprep.subr.mxu0 0.0
          %526 = vmatpush1.msra.mxu0 0.0
          %527 = vmatprep.subr.mxu0 0.0
          %528 = vmatpush1.msra.mxu0 0.0
          %529 = vmatprep.subr.mxu0 0.0
          %530 = vmatpush1.msra.mxu0 0.0
          %531 = vmatprep.subr.mxu0 0.0
          %532 = vmatpush1.msra.mxu0 0.0
          %533 = vmatprep.subr.mxu0 0.0
          %534 = vmatpush1.msra.mxu0 0.0
          %535 = vmatprep.subr.mxu0 0.0
          %536 = vmatpush1.msra.mxu0 0.0
          %537 = vmatprep.subr.mxu0 0.0
          %538 = vmatpush1.msra.mxu0 0.0
          %539 = vmatprep.subr.mxu0 0.0
          %540 = vmatpush1.msra.mxu0 0.0
          %541 = vmatprep.subr.mxu0 0.0
          %542 = vmatpush1.msra.mxu0 0.0
          %543 = vmatprep.subr.mxu0 0.0
          %544 = vmatpush1.msra.mxu0 0.0
          %545 = vmatprep.subr.mxu0 0.0
          %546 = vmatpush1.msra.mxu0 0.0
          %547 = vmatprep.subr.mxu0 0.0
          %548 = vmatpush1.msra.mxu0 0.0
          %549 = vmatprep.subr.mxu0 0.0
          %550 = vmatpush1.msra.mxu0 0.0
          %551 = vmatprep.subr.mxu0 0.0
          %552 = vmatpush1.msra.mxu0 0.0
          %553 = vmatprep.subr.mxu0 0.0
          %554 = vmatpush1.msra.mxu0 0.0
          %555 = vmatprep.mubr.f32.mxu0 0.0
          %556 = vmatmul.mubr.f32.gmra.mrb[0].mxu0 %v489
          %v557 = vpop.f32.mrb[0].mxu0
          %v558 = vadd.f32 0.0, %v557
          %v559 = vpop.f32.mrb[0].mxu0
          %560 = vdwg.mxu0
          %v561 = vmul.f32 %v487, %v487
          %v562 = vsel %vm392, %v561, 0.0
          %563 = vadd.xlane.f32.xlu0 %v562
          %v564 = vpop.xlane.xlu0 %563
          %v565 = vmul.f32 %v564, 0.015625
          %v566 = vsub.f32 %v558, %v565
          %v567 = vsel %vm471, %v558, -inf
          %568 = vmax.xlane.f32.xlu0 %v567
          %v569 = vpop.xlane.xlu0 %568
          %v570 = vsub.f32 %v566, %v569
          %v571 = vmul.f32 %v570, 1.442695
          %v572 = vpow.pop %v571
          %v573 = vadd.f32 %v572, 0.0001
          %v574 = vmul.f32 %v573, 0.125
          %575 = vst.msk [vmem:[#allocation2] sm:$0xff] %vm471, %v574
          %576 = vst.msk [vmem:[#allocation3] sm:$0xff] %vm392, 0.0
          %577 = vst.msk [vmem:[#allocation3 + $0x8] sm:$0xff] %vm392, 0.0
          %578 = vst.msk [vmem:[#allocation3 + $0x10] sm:$0xff] %vm392, 0.0
          %579 = vst.msk [vmem:[#allocation3 + $0x18] sm:$0xff] %vm392, 0.0
          %580 = vst.msk [vmem:[#allocation3 + $0x20] sm:$0xff] %vm392, 0.0
          %581 = vst.msk [vmem:[#allocation3 + $0x28] sm:$0xff] %vm392, 0.0
          %582 = vst.msk [vmem:[#allocation3 + $0x30] sm:$0xff] %vm392, 0.0
          %583 = vst.msk [vmem:[#allocation3 + $0x38] sm:$0xff] %vm392, 0.0
          %vm584 = vcmask 516096
          %585 = vst.msk [vmem:[#allocation4] sm:$0x1] %vm584, 0.0
          %vm586 = vcmask 0
          %587 = vst.msk [vmem:[#allocation5] sm:$0x1] %vm586, %v482
        $region56: #{tpu_custom_call.1} parent=39 // pred_fallthru
          _
        %v588 = vld [vmem:[#allocation5] sm:$0x1]
        %v589 = vmax.f32 %v588, %v482
        %v590 = vsub.f32 %v588, %v589
        %v591 = vmul.f32 %v590, 1.442695
        %v592 = vpow.pop %v591
        %v593 = vsub.f32 %v463, %v470
        %v595 = vlaneseq
        %v596 = vshrl.u32 %v595, 7
        %v597 = vsub.s32 0, %v596
        %v598 = vrot.slane %v589, %v597
        %599 = vset.pattern.permute.xlu0 0
        %600 = vperm.xlu0 %599, %v598
        %v601 = vpop.permute.xlu0 %600
        %v603 = vsub.f32 %v593, %v601
        %v604 = vmul.f32 %v603, 1.442695
        %v605 = vpow.pop %v604
        %v606 = vadd.f32 %v605, 0.0001
        %v607 = vmul.f32 %v606, 0.125
        %v608 = vld [vmem:[#allocation3] sm:$0xff]
        %v609 = vld [vmem:[#allocation3 + $0x8] sm:$0xff]
        %v610 = vld [vmem:[#allocation3 + $0x10] sm:$0xff]
        %v611 = vld [vmem:[#allocation3 + $0x18] sm:$0xff]
        %v612 = vld [vmem:[#allocation3 + $0x20] sm:$0xff]
        %v613 = vld [vmem:[#allocation3 + $0x28] sm:$0xff]
        %v614 = vld [vmem:[#allocation3 + $0x30] sm:$0xff]
        %v615 = vld [vmem:[#allocation3 + $0x38] sm:$0xff]
        %v617 = vlaneseq
        %v618 = vshrl.u32 %v617, 7
        %v619 = vsub.s32 0, %v618
        %v620 = vrot.slane %v592, %v619
        %621 = vset.pattern.permute.xlu0 0
        %622 = vperm.xlu0 %621, %v620
        %v623 = vpop.permute.xlu0 %622
        %v625 = vmul.f32 %v623, %v608
        %v626 = vmul.f32 %v623, %v609
        %v627 = vmul.f32 %v623, %v610
        %v628 = vmul.f32 %v623, %v611
        %v629 = vmul.f32 %v623, %v612
        %v630 = vmul.f32 %v623, %v613
        %v631 = vmul.f32 %v623, %v614
        %v632 = vmul.f32 %v623, %v615
        %633 = vxpose.xlu0.b32.start [1/16] %v607, 128
        %634 = vxpose.xlu0.b32.cont [2/16] 0.0, 128
        %635 = vxpose.xlu0.b32.cont [3/16] 0.0, 128
        %636 = vxpose.xlu0.b32.cont [4/16] 0.0, 128
        %637 = vxpose.xlu0.b32.cont [5/16] 0.0, 128
        %638 = vxpose.xlu0.b32.cont [6/16] 0.0, 128
        %639 = vxpose.xlu0.b32.cont [7/16] 0.0, 128
        %640 = vxpose.xlu0.b32.cont [8/16] 0.0, 128
        %641 = vxpose.xlu0.b32.cont [9/16] 0.0, 128
        %642 = vxpose.xlu0.b32.cont [10/16] 0.0, 128
        %643 = vxpose.xlu0.b32.cont [11/16] 0.0, 128
        %644 = vxpose.xlu0.b32.cont [12/16] 0.0, 128
        %645 = vxpose.xlu0.b32.cont [13/16] 0.0, 128
        %646 = vxpose.xlu0.b32.cont [14/16] 0.0, 128
        %647 = vxpose.xlu0.b32.cont [15/16] 0.0, 128
        %648 = vxpose.xlu0.b32.end [16/16] 0.0, 128
        %v649 = vpop.trf.xlu0
        %v650 = vpop.trf.xlu0
        %v651 = vpop.trf.xlu0
        %v652 = vpop.trf.xlu0
        %v653 = vpop.trf.xlu0
        %v654 = vpop.trf.xlu0
        %v655 = vpop.trf.xlu0
        %v656 = vpop.trf.xlu0
        %v657 = vpop.trf.xlu0
        %v658 = vpop.trf.xlu0
        %v659 = vpop.trf.xlu0
        %v660 = vpop.trf.xlu0
        %v661 = vpop.trf.xlu0
        %v662 = vpop.trf.xlu0
        %v663 = vpop.trf.xlu0
        %v664 = vpop.trf.xlu0
        %vm665 = vcmask 64512
        %v667 = vsel %vm665, %v649, 0
        %v670 = vsel %vm665, %v650, 0
        %v673 = vsel %vm665, %v651, 0
        %v676 = vsel %vm665, %v652, 0
        %v679 = vsel %vm665, %v653, 0
        %v682 = vsel %vm665, %v654, 0
        %v685 = vsel %vm665, %v655, 0
        %v688 = vsel %vm665, %v656, 0
        %690 = vmatprep.subr.mxu0 0.0
        %691 = vmatpush1.msra.mxu0 %v391
        %692 = vmatprep.subr.mxu0 0.0
        %693 = vmatpush1.msra.mxu0 0.0
        %694 = vmatprep.subr.mxu0 0.0
        %695 = vmatpush1.msra.mxu0 0.0
        %696 = vmatprep.subr.mxu0 0.0
        %697 = vmatpush1.msra.mxu0 0.0
        %698 = vmatprep.subr.mxu0 0.0
        %699 = vmatpush1.msra.mxu0 0.0
        %700 = vmatprep.subr.mxu0 0.0
        %701 = vmatpush1.msra.mxu0 0.0
        %702 = vmatprep.subr.mxu0 0.0
        %703 = vmatpush1.msra.mxu0 0.0
        %704 = vmatprep.subr.mxu0 0.0
        %705 = vmatpush1.msra.mxu0 0.0
        %706 = vmatprep.subr.mxu0 0.0
        %707 = vmatpush1.msra.mxu0 0.0
        %708 = vmatprep.subr.mxu0 0.0
        %709 = vmatpush1.msra.mxu0 0.0
        %710 = vmatprep.subr.mxu0 0.0
        %711 = vmatpush1.msra.mxu0 0.0
        %712 = vmatprep.subr.mxu0 0.0
        %713 = vmatpush1.msra.mxu0 0.0
        %714 = vmatprep.subr.mxu0 0.0
        %715 = vmatpush1.msra.mxu0 0.0
        %716 = vmatprep.subr.mxu0 0.0
        %717 = vmatpush1.msra.mxu0 0.0
        %718 = vmatprep.subr.mxu0 0.0
        %719 = vmatpush1.msra.mxu0 0.0
        %720 = vmatprep.subr.mxu0 0.0
        %721 = vmatpush1.msra.mxu0 0.0
        %722 = vmatprep.subr.mxu0 0.0
        %723 = vmatpush1.msra.mxu0 0.0
        %724 = vmatprep.subr.mxu0 0.0
        %725 = vmatpush1.msra.mxu0 0.0
        %726 = vmatprep.subr.mxu0 0.0
        %727 = vmatpush1.msra.mxu0 0.0
        %728 = vmatprep.subr.mxu0 0.0
        %729 = vmatpush1.msra.mxu0 0.0
        %730 = vmatprep.subr.mxu0 0.0
        %731 = vmatpush1.msra.mxu0 0.0
        %732 = vmatprep.subr.mxu0 0.0
        %733 = vmatpush1.msra.mxu0 0.0
        %734 = vmatprep.subr.mxu0 0.0
        %735 = vmatpush1.msra.mxu0 0.0
        %736 = vmatprep.subr.mxu0 0.0
        %737 = vmatpush1.msra.mxu0 0.0
        %738 = vmatprep.subr.mxu0 0.0
        %739 = vmatpush1.msra.mxu0 0.0
        %740 = vmatprep.subr.mxu0 0.0
        %741 = vmatpush1.msra.mxu0 0.0
        %742 = vmatprep.subr.mxu0 0.0
        %743 = vmatpush1.msra.mxu0 0.0
        %744 = vmatprep.subr.mxu0 0.0
        %745 = vmatpush1.msra.mxu0 0.0
        %746 = vmatprep.subr.mxu0 0.0
        %747 = vmatpush1.msra.mxu0 0.0
        %748 = vmatprep.subr.mxu0 0.0
        %749 = vmatpush1.msra.mxu0 0.0
        %750 = vmatprep.subr.mxu0 0.0
        %751 = vmatpush1.msra.mxu0 0.0
        %752 = vmatprep.subr.mxu0 0.0
        %753 = vmatpush1.msra.mxu0 0.0
        %754 = vmatprep.mubr.f32.mxu0 0.0
        %755 = vmatmul.mubr.f32.gmra.mrb[0].mxu0 %v667
        %v756 = vpop.f32.mrb[0].mxu0
        %v757 = vadd.f32 0.0, %v756
        %v758 = vpop.f32.mrb[0].mxu0
        %759 = vmatprep.mubr.f32.mxu0 0.0
        %760 = vmatmul.mubr.f32.gmra.mrb[0].mxu0 %v670
        %v761 = vpop.f32.mrb[0].mxu0
        %v762 = vadd.f32 0.0, %v761
        %v763 = vpop.f32.mrb[0].mxu0
        %764 = vmatprep.mubr.f32.mxu0 0.0
        %765 = vmatmul.mubr.f32.gmra.mrb[0].mxu0 %v673
        %v766 = vpop.f32.mrb[0].mxu0
        %v767 = vadd.f32 0.0, %v766
        %v768 = vpop.f32.mrb[0].mxu0
        %769 = vmatprep.mubr.f32.mxu0 0.0
        %770 = vmatmul.mubr.f32.gmra.mrb[0].mxu0 %v676
        %v771 = vpop.f32.mrb[0].mxu0
        %v772 = vadd.f32 0.0, %v771
        %v773 = vpop.f32.mrb[0].mxu0
        %774 = vmatprep.mubr.f32.mxu0 0.0
        %775 = vmatmul.mubr.f32.gmra.mrb[0].mxu0 %v679
        %v776 = vpop.f32.mrb[0].mxu0
        %v777 = vadd.f32 0.0, %v776
        %v778 = vpop.f32.mrb[0].mxu0
        %779 = vmatprep.mubr.f32.mxu0 0.0
        %780 = vmatmul.mubr.f32.gmra.mrb[0].mxu0 %v682
        %v781 = vpop.f32.mrb[0].mxu0
        %v782 = vadd.f32 0.0, %v781
        %v783 = vpop.f32.mrb[0].mxu0
        %784 = vmatprep.mubr.f32.mxu0 0.0
        %785 = vmatmul.mubr.f32.gmra.mrb[0].mxu0 %v685
        %v786 = vpop.f32.mrb[0].mxu0
        %v787 = vadd.f32 0.0, %v786
        %v788 = vpop.f32.mrb[0].mxu0
        %789 = vmatprep.mubr.f32.mxu0 0.0
        %790 = vmatmul.mubr.f32.gmra.mrb[0].mxu0 %v688
        %v791 = vpop.f32.mrb[0].mxu0
        %v792 = vadd.f32 0.0, %v791
        %v793 = vpop.f32.mrb[0].mxu0
        %794 = vdwg.mxu0
        %v795 = vadd.f32 %v625, %v757
        %v796 = vadd.f32 %v626, %v762
        %v797 = vadd.f32 %v627, %v767
        %v798 = vadd.f32 %v628, %v772
        %v799 = vadd.f32 %v629, %v777
        %v800 = vadd.f32 %v630, %v782
        %v801 = vadd.f32 %v631, %v787
        %v802 = vadd.f32 %v632, %v792
        %803 = vst.msk [vmem:[#allocation3] sm:$0xff] %vm392, %v795
        %804 = vst.msk [vmem:[#allocation3 + $0x8] sm:$0xff] %vm392, %v796
        %805 = vst.msk [vmem:[#allocation3 + $0x10] sm:$0xff] %vm392, %v797
        %806 = vst.msk [vmem:[#allocation3 + $0x18] sm:$0xff] %vm392, %v798
        %807 = vst.msk [vmem:[#allocation3 + $0x20] sm:$0xff] %vm392, %v799
        %808 = vst.msk [vmem:[#allocation3 + $0x28] sm:$0xff] %vm392, %v800
        %809 = vst.msk [vmem:[#allocation3 + $0x30] sm:$0xff] %vm392, %v801
        %810 = vst.msk [vmem:[#allocation3 + $0x38] sm:$0xff] %vm392, %v802
        %v811 = vld [vmem:[#allocation4] sm:$0x1]
        %812 = vset.pattern.permute.xlu0 0
        %813 = vperm.xlu0 %812, %v592
        %v814 = vpop.permute.xlu0 %813
        %v816 = vlaneseq
        %v817 = vshrl.u32 %v816, 7
        %v818 = vsub.s32 0, %v817
        %v819 = vrot.slane %v814, %v818
        %v820 = vmul.f32 %v819, %v811
        %v821 = vsel %vm471, %v607, 0.0
        %v822 = vrot.slane %v821, 4
        %v823 = vadd.f32 %v821, %v822
        %v824 = vrot.slane %v823, 2
        %v825 = vadd.f32 %v823, %v824
        %v826 = vrot.slane %v825, 1
        %v827 = vadd.f32 %v825, %v826
        %v828 = vadd.f32 %v820, %v827
        %vm829 = vcmask 516096
        %830 = vst.msk [vmem:[#allocation4] sm:$0x1] %vm829, %v828
        %vm831 = vcmask 0
        %832 = vst.msk [vmem:[#allocation5] sm:$0x1] %vm831, %v589
        // Predicated region
        $region57: #{tpu_custom_call.1} parent=39 // pred_check
          %p833 = pneg %p483
        $region58: #{tpu_custom_call.1} parent=39 // pred_check_branch
          %835 = sbr.rel (%p833) target = $region60
        $region59: #{tpu_custom_call.1} parent=39 // pred_region
          %v836 = vld [vmem:[#allocation2] sm:$0xff]
          %v837 = vld [vmem:[#allocation3] sm:$0xff]
          %v838 = vld [vmem:[#allocation3 + $0x8] sm:$0xff]
          %v839 = vld [vmem:[#allocation3 + $0x10] sm:$0xff]
          %v840 = vld [vmem:[#allocation3 + $0x18] sm:$0xff]
          %v841 = vld [vmem:[#allocation3 + $0x20] sm:$0xff]
          %v842 = vld [vmem:[#allocation3 + $0x28] sm:$0xff]
          %v843 = vld [vmem:[#allocation3 + $0x30] sm:$0xff]
          %v844 = vld [vmem:[#allocation3 + $0x38] sm:$0xff]
          %v846 = vsel %vm471, %v836, 0
          %848 = vmatprep.subr.mxu0 0.0
          %849 = vmatpush1.msra.mxu0 %v837
          %850 = vmatprep.subr.mxu0 0.0
          %851 = vmatpush1.msra.mxu0 %v838
          %852 = vmatprep.subr.mxu0 0.0
          %853 = vmatpush1.msra.mxu0 %v839
          %854 = vmatprep.subr.mxu0 0.0
          %855 = vmatpush1.msra.mxu0 %v840
          %856 = vmatprep.subr.mxu0 0.0
          %857 = vmatpush1.msra.mxu0 %v841
          %858 = vmatprep.subr.mxu0 0.0
          %859 = vmatpush1.msra.mxu0 %v842
          %860 = vmatprep.subr.mxu0 0.0
          %861 = vmatpush1.msra.mxu0 %v843
          %862 = vmatprep.subr.mxu0 0.0
          %863 = vmatpush1.msra.mxu0 %v844
          %864 = vmatprep.subr.mxu0 0.0
          %865 = vmatpush1.msra.mxu0 0.0
          %866 = vmatprep.subr.mxu0 0.0
          %867 = vmatpush1.msra.mxu0 0.0
          %868 = vmatprep.subr.mxu0 0.0
          %869 = vmatpush1.msra.mxu0 0.0
          %870 = vmatprep.subr.mxu0 0.0
          %871 = vmatpush1.msra.mxu0 0.0
          %872 = vmatprep.subr.mxu0 0.0
          %873 = vmatpush1.msra.mxu0 0.0
          %874 = vmatprep.subr.mxu0 0.0
          %875 = vmatpush1.msra.mxu0 0.0
          %876 = vmatprep.subr.mxu0 0.0
          %877 = vmatpush1.msra.mxu0 0.0
          %878 = vmatprep.subr.mxu0 0.0
          %879 = vmatpush1.msra.mxu0 0.0
          %880 = vmatprep.subr.mxu0 0.0
          %881 = vmatpush1.msra.mxu0 0.0
          %882 = vmatprep.subr.mxu0 0.0
          %883 = vmatpush1.msra.mxu0 0.0
          %884 = vmatprep.subr.mxu0 0.0
          %885 = vmatpush1.msra.mxu0 0.0
          %886 = vmatprep.subr.mxu0 0.0
          %887 = vmatpush1.msra.mxu0 0.0
          %888 = vmatprep.subr.mxu0 0.0
          %889 = vmatpush1.msra.mxu0 0.0
          %890 = vmatprep.subr.mxu0 0.0
          %891 = vmatpush1.msra.mxu0 0.0
          %892 = vmatprep.subr.mxu0 0.0
          %893 = vmatpush1.msra.mxu0 0.0
          %894 = vmatprep.subr.mxu0 0.0
          %895 = vmatpush1.msra.mxu0 0.0
          %896 = vmatprep.subr.mxu0 0.0
          %897 = vmatpush1.msra.mxu0 0.0
          %898 = vmatprep.subr.mxu0 0.0
          %899 = vmatpush1.msra.mxu0 0.0
          %900 = vmatprep.subr.mxu0 0.0
          %901 = vmatpush1.msra.mxu0 0.0
          %902 = vmatprep.subr.mxu0 0.0
          %903 = vmatpush1.msra.mxu0 0.0
          %904 = vmatprep.subr.mxu0 0.0
          %905 = vmatpush1.msra.mxu0 0.0
          %906 = vmatprep.subr.mxu0 0.0
          %907 = vmatpush1.msra.mxu0 0.0
          %908 = vmatprep.subr.mxu0 0.0
          %909 = vmatpush1.msra.mxu0 0.0
          %910 = vmatprep.subr.mxu0 0.0
          %911 = vmatpush1.msra.mxu0 0.0
          %912 = vmatprep.mubr.f32.mxu0 0.0
          %913 = vmatmul.mubr.f32.gmra.mrb[0].mxu0 %v846
          %v914 = vpop.f32.mrb[0].mxu0
          %v915 = vadd.f32 0.0, %v914
          %v916 = vpop.f32.mrb[0].mxu0
          %917 = vdwg.mxu0
          %v918 = vld [vmem:[#allocation4] sm:$0x1]
          %v920 = vlaneseq
          %v921 = vshrl.u32 %v920, 7
          %v922 = vsub.s32 0, %v921
          %v923 = vrot.slane %v918, %v922
          %v925 = vmul.f32 %v836, %v923
          %v926 = vsel %vm471, %v925, 0.0
          %927 = vadd.xlane.f32.xlu0 %v926
          %v928 = vpop.xlane.xlu0 %927
          %v929 = vmax.f32 %v928, 1e-30
          %v930 = vrcp.pop %v929
          %v931 = vmul.f32 %v915, %v930
          %932 = vst.msk [vmem:[%s370] sm:$0xff] %vm392, %v931
        $region60: #{tpu_custom_call.1} parent=39 // pred_fallthru
          _
        %s933 = sand.u32 %s191, 1
        %s934 = scalar_lea.sflag [#allocation8], %s933
        %s935 = sand.u32 %s191, 1
        %s936 = smul.addr %s935, 8
        %s937 = scalar_lea.vmem [#allocation12], %s936
        // Predicated region
        $region61: #{tpu_custom_call.1} parent=39 // pred_check
          %p938 = pneg %p201
        $region62: #{tpu_custom_call.1} parent=39 // pred_check_branch
          %940 = sbr.rel (%p938) target = $region64
        $region63: #{tpu_custom_call.1} parent=39 // pred_region
          %s942 = ssub.s32 128, 128
          %943 = vsyncadd %s934, %s942
          %s944 = smul.addr %s30, 2
          %s945 = sadd.s32 %s31, %s944
          %s946 = smul.addr %s945, 128
          %s947 = scalar_lea.hbm %s5, %s946
          %s949 = sshll.u32 %s937, 4
          %s950 = int_to_ptr.vmem [resolvable:$true] %s949
          %952 = dma.vmem_to_hbm [thread:$0]  %s950, 128, %s947, %s934
        $region64: #{tpu_custom_call.1} parent=39 // pred_fallthru
          _
      $region40: #{tpu_custom_call.1} parent=5 // pred_fallthru
        _
      %p953 = scmp.le.s32.totalorder 2, %s20
      // Predicated region
      $region65: #{tpu_custom_call.1} parent=5 // pred_check
        %p954 = pneg %p953
      $region66: #{tpu_custom_call.1} parent=5 // pred_check_branch
        %956 = sbr.rel (%p954) target = $region68
      $region67: #{tpu_custom_call.1} parent=5 // pred_region
        %s957 = ssub.s32 %s20, 2
        // Predicated region
        $region69: #{tpu_custom_call.1} parent=67 // pred_check
          %p958 = pneg %p207
        $region70: #{tpu_custom_call.1} parent=67 // pred_check_branch
          %960 = sbr.rel (%p958) target = $region72
        $region71: #{tpu_custom_call.1} parent=67 // pred_region
          %s961 = sand.u32 %s192, 1
          %s962 = scalar_lea.sflag [#allocation8], %s961
          %s963 = sand.u32 %s192, 1
          %s964 = smul.addr %s963, 8
          %s965 = scalar_lea.vmem [#allocation12], %s964
          %966 = dma.done %s962, 128
        $region72: #{tpu_custom_call.1} parent=67 // pred_fallthru
          _
      $region68: #{tpu_custom_call.1} parent=5 // pred_fallthru
        _
    $region6: #{tpu_custom_call.1} parent=1 // loop_footer
      %s24 = sadd.s32 1, %s20
    $region7: #{tpu_custom_call.1} parent=1 // loop_footer_branch
      %19 = sbr.rel target = $region3
    $region8: #{tpu_custom_call.1} parent=1 // loop_exit
      _
    %967 = vsyncpa [#allocation7], 1
    %s968 = scalar_lea.sflag [#allocation7], 1
    %969 = vsyncpa %s968, 1
    %970 = vsyncpa [#allocation10], 1
    %s971 = scalar_lea.sflag [#allocation10], 1
    %972 = vsyncpa %s971, 1
    %973 = vsyncpa [#allocation8], 1
    %s974 = scalar_lea.sflag [#allocation8], 1
    %975 = vsyncpa %s974, 1

</llo_original>
